<compile_context>
chip_gen: v5e
topology: v5e:2x2
jax: 0.10.0
libtpu: 0.0.40
codegen_flags: <defaults>
</compile_context>

<pallas_src>
import functools

import jax
import jax.numpy as jnp
from jax import lax
from jax.experimental import pallas as pl
from jax.experimental.pallas import tpu as pltpu

_LANES = 512  # lane-dense column width for the flattened planes (multiple of 128)


# --------------------------------------------------------------------------
# Pallas kernel: fused spectral-convergence + log-STFT-magnitude partial sums.
# --------------------------------------------------------------------------
def _stft_loss_kernel(xr_ref, xi_ref, yr_ref, yi_ref, out_ref, *,
                      m_rows, tile_rows, need_mask):
    eps = jnp.float32(1e-7)

    xr = xr_ref[...]
    xi = xi_ref[...]
    yr = yr_ref[...]
    yi = yi_ref[...]

    # Squared magnitudes, clamped exactly like the torch stft() helper.
    sx = jnp.maximum(xr * xr + xi * xi, eps)          # = x_mag ** 2
    sy = jnp.maximum(yr * yr + yi * yi, eps)          # = y_mag ** 2

    # 2 * log(mag)/mag == log(mag^2) * rsqrt(mag^2)  (0.5 folded out; applied
    # once in the wrapper since all sums are linear).
    xsc = jnp.log(sx) * lax.rsqrt(sx)
    ysc = jnp.log(sy) * lax.rsqrt(sy)

    # Log-STFT difference magnitude (clamp scaled by 4 to match the fold-out).
    dlr = xr * xsc - yr * ysc
    dli = xi * xsc - yi * ysc
    lg_term = jnp.sqrt(jnp.maximum(dlr * dlr + dli * dli, jnp.float32(4e-7)))

    # Spectral-convergence numerator: |x_stft - y_stft|^2 (clamped).
    dr = xr - yr
    di = xi - yi
    sc_term = jnp.maximum(dr * dr + di * di, eps)

    # Pack the three partial sums into lanes 0/1/2 of one (1, 8, 128) block.
    lane = lax.broadcasted_iota(jnp.int32, out_ref.shape, len(out_ref.shape) - 1)

    def write(sc_s, yn_s, lg_s):
        out_ref[...] = jnp.where(
            lane == 0, sc_s,
            jnp.where(lane == 1, yn_s,
                      jnp.where(lane == 2, lg_s, jnp.float32(0.0))))

    if need_mask:
        # Only the last block can be partial; full tiles take the fast path.
        last = pl.num_programs(0) - 1

        @pl.when(pl.program_id(0) != last)
        def _():
            write(jnp.sum(sc_term), jnp.sum(sy), jnp.sum(lg_term))

        @pl.when(pl.program_id(0) == last)
        def _():
            rows = (pl.program_id(0) * tile_rows
                    + lax.broadcasted_iota(jnp.int32, (sc_term.shape[0], 1), 0))
            valid = rows < m_rows
            z = jnp.float32(0.0)
            write(jnp.sum(jnp.where(valid, sc_term, z)),
                  jnp.sum(jnp.where(valid, sy, z)),
                  jnp.sum(jnp.where(valid, lg_term, z)))
    else:
        write(jnp.sum(sc_term), jnp.sum(sy), jnp.sum(lg_term))


# --------------------------------------------------------------------------
# Small pure-JAX elementwise sums for the <512-element ragged tail (or the
# degenerate case where the input is smaller than one lane-dense row).
# --------------------------------------------------------------------------
def _elem_sums(xr, xi, yr, yi):
    eps = jnp.float32(1e-7)
    sx = jnp.maximum(xr * xr + xi * xi, eps)
    sy = jnp.maximum(yr * yr + yi * yi, eps)
    xsc = jnp.log(sx) * lax.rsqrt(sx)
    ysc = jnp.log(sy) * lax.rsqrt(sy)
    dlr = xr * xsc - yr * ysc
    dli = xi * xsc - yi * ysc
    lg = jnp.sqrt(jnp.maximum(dlr * dlr + dli * dli, jnp.float32(4e-7)))
    dr = xr - yr
    di = xi - yi
    sc = jnp.maximum(dr * dr + di * di, eps)
    return jnp.sum(sc), jnp.sum(sy), jnp.sum(lg)


def _row_tile(m_rows, n_cols):
    """Row tile: ~2 MiB per stream buffer, >= 2 grid blocks, multiple of 8."""
    tr = max(8, ((512 * 1024) // max(n_cols, 1)) // 8 * 8)   # ~512K f32 elems
    if m_rows >= 16:
        half = -(-m_rows // 2)            # cdiv(m, 2)
        half = -(-half // 8) * 8          # round up to multiple of 8
        tr = min(tr, half)                # guarantee G >= 2 (v7x megacore)
    if m_rows >= 8:
        tr = min(tr, (m_rows // 8) * 8)
    else:
        tr = m_rows                       # block == full dim (legal)
    return tr


def _stft_losses_pallas(xr, xi, yr, yi):
    """xr, xi, yr, yi: (B, n_frames, F) float32 planes -> (sc_loss, mag_loss)."""
    total = xr.size
    flats = [a.reshape(-1) for a in (xr, xi, yr, yi)]        # free reshapes

    C = _LANES
    M = total // C
    n_kern = M * C

    if M == 0:
        sc_sum, yn_sum, lg_sum = _elem_sums(*flats)
    else:
        mats = [f[:n_kern].reshape(M, C) for f in flats]     # lane-dense views

        TR = _row_tile(M, C)
        G = pl.cdiv(M, TR)
        need_mask = (M % TR) != 0

        kernel = functools.partial(_stft_loss_kernel, m_rows=M,
                                   tile_rows=TR, need_mask=need_mask)

        partials = pl.pallas_call(
            kernel,
            out_shape=jax.ShapeDtypeStruct((G, 8, 128), jnp.float32),
            grid_spec=pltpu.PrefetchScalarGridSpec(
                num_scalar_prefetch=0,
                grid=(G,),
                in_specs=[pl.BlockSpec((TR, C), lambda i: (i, 0))] * 4,
                out_specs=pl.BlockSpec((1, 8, 128), lambda i: (i, 0, 0)),
            ),
            compiler_params=pltpu.CompilerParams(
                dimension_semantics=("parallel",),
                vmem_limit_bytes=32 * 1024 * 1024,
            ),
        )(*mats)

        sc_sum = jnp.sum(partials[:, 0, 0])
        yn_sum = jnp.sum(partials[:, 0, 1])
        lg_sum = jnp.sum(partials[:, 0, 2])

        if n_kern < total:
            t_sc, t_yn, t_lg = _elem_sums(*(f[n_kern:] for f in flats))
            sc_sum = sc_sum + t_sc
            yn_sum = yn_sum + t_yn
            lg_sum = lg_sum + t_lg

    sc_loss = jnp.sqrt(sc_sum) / jnp.sqrt(yn_sum)
    mag_loss = jnp.float32(0.5) * lg_sum / jnp.float32(total)   # undo folded 0.5
    return sc_loss, mag_loss


# --------------------------------------------------------------------------
# STFT (framing + rFFT) — stays in XLA; matches torch.stft(center=True).
# No transpose: the kernel consumes the (B, n_frames, F) layout directly.
# --------------------------------------------------------------------------
def _hann_window(win_length):
    n = jnp.arange(win_length, dtype=jnp.float32)
    return 0.5 - 0.5 * jnp.cos(2.0 * jnp.pi * n / win_length)


def _stft_real_imag(x, fft_size, hop_size, win_length, window):
    # TODO(synk): the FFT itself has no Pallas equivalent; framing + jnp.fft.rfft
    # are computed by XLA, only the loss math runs in the Pallas kernel.
    pad_l = (fft_size - win_length) // 2
    win = jnp.pad(window, (pad_l, fft_size - win_length - pad_l))
    half = fft_size // 2
    xp = jnp.pad(x, ((0, 0), (half, half)), mode="reflect")
    n_frames = 1 + (xp.shape[1] - fft_size) // hop_size
    idx = (jnp.arange(n_frames)[:, None] * hop_size
           + jnp.arange(fft_size)[None, :])
    frames = xp[:, idx] * win[None, None, :]                 # (B, frames, fft)
    spec = jnp.fft.rfft(frames, axis=-1)                     # (B, frames, F)
    return (jnp.real(spec).astype(jnp.float32),
            jnp.imag(spec).astype(jnp.float32))


@functools.partial(jax.jit, static_argnames=("fft_size", "hop_size", "win_length"))
def stft_loss(x, y, window, *, fft_size, hop_size, win_length):
    """STFTLoss.forward: signals (B, T) -> (sc_loss, mag_loss)."""
    xr, xi = _stft_real_imag(x, fft_size, hop_size, win_length, window)
    yr, yi = _stft_real_imag(y, fft_size, hop_size, win_length, window)
    return _stft_losses_pallas(xr, xi, yr, yi)


# --------------------------------------------------------------------------
# Pure-JAX reference of the torch loss modules (same STFT values; the losses
# are layout-invariant so (B, frames, F) is fine).
# --------------------------------------------------------------------------
def _reference_losses(xr, xi, yr, yi):
    x_mag = jnp.sqrt(jnp.maximum(xr ** 2 + xi ** 2, 1e-7))
    y_mag = jnp.sqrt(jnp.maximum(yr ** 2 + yi ** 2, 1e-7))
    # SpectralConvergenceLoss
    dr = xr - yr
    di = xi - yi
    dif_mag = jnp.sqrt(jnp.maximum(dr ** 2 + di ** 2, 1e-7))
    sc = (jnp.linalg.norm(dif_mag.reshape(-1))
          / jnp.linalg.norm(y_mag.reshape(-1)))
    # LogSTFTLoss
    xs = jnp.log(x_mag) / x_mag
    ys = jnp.log(y_mag) / y_mag
    dlr = xr * xs - yr * ys
    dli = xi * xs - yi * ys
    mag = jnp.mean(jnp.sqrt(jnp.maximum(dlr ** 2 + dli ** 2, 1e-7)))
    return sc, mag


if __name__ == "__main__":
    key = jax.random.PRNGKey(0)
    B, T_sig = 2, 2048
    fft_size, hop_size, win_length = 256, 64, 128   # small STFT consistent w/ module

    k1, k2 = jax.random.split(key)
    x = jax.random.normal(k1, (B, T_sig), dtype=jnp.float32)
    y = jax.random.normal(k2, (B, T_sig), dtype=jnp.float32)
    window = _hann_window(win_length)

    sc_loss, mag_loss = stft_loss(x, y, window, fft_size=fft_size,
                                  hop_size=hop_size, win_length=win_length)
    jax.block_until_ready((sc_loss, mag_loss))

    xr, xi = _stft_real_imag(x, fft_size, hop_size, win_length, window)
    yr, yi = _stft_real_imag(y, fft_size, hop_size, win_length, window)
    sc_ref, mag_ref = _reference_losses(xr, xi, yr, yi)

    assert jnp.allclose(sc_loss, sc_ref, rtol=1e-4, atol=1e-5), (sc_loss, sc_ref)
    assert jnp.allclose(mag_loss, mag_ref, rtol=1e-4, atol=1e-5), (mag_loss, mag_ref)
    print("KERNEL_OK")
</pallas_src>

<mosaic_0001>
module attributes {stable_mosaic.version = 11 : i64} {
  func.func @_stft_loss_kernel(%arg0: i32, %arg1: memref<8x512xf32, #tpu.memory_space<vmem>>, %arg2: memref<8x512xf32, #tpu.memory_space<vmem>>, %arg3: memref<8x512xf32, #tpu.memory_space<vmem>>, %arg4: memref<8x512xf32, #tpu.memory_space<vmem>>, %arg5: memref<1x8x128xf32, #tpu.memory_space<vmem>>) attributes {dimension_semantics = [#tpu.dimension_semantics<parallel>], iteration_bounds = array<i64: 2>, scalar_prefetch = 0 : i64, scratch_operands = 0 : i64, tpu.core_type = #tpu.core_type<tc>, window_params = [{transform_indices = @transform_0, window_bounds = array<i64: 8, 512>}, {transform_indices = @transform_1, window_bounds = array<i64: 8, 512>}, {transform_indices = @transform_2, window_bounds = array<i64: 8, 512>}, {transform_indices = @transform_3, window_bounds = array<i64: 8, 512>}, {transform_indices = @transform_4, window_bounds = array<i64: 1, 8, 128>}]} {
    %c0 = arith.constant 0 : index
    %c0_0 = arith.constant 0 : index
    %0 = vector.load %arg1[%c0, %c0_0] : memref<8x512xf32, #tpu.memory_space<vmem>>, vector<8x512xf32>
    %c0_1 = arith.constant 0 : index
    %c0_2 = arith.constant 0 : index
    %1 = vector.load %arg2[%c0_1, %c0_2] : memref<8x512xf32, #tpu.memory_space<vmem>>, vector<8x512xf32>
    %c0_3 = arith.constant 0 : index
    %c0_4 = arith.constant 0 : index
    %2 = vector.load %arg3[%c0_3, %c0_4] : memref<8x512xf32, #tpu.memory_space<vmem>>, vector<8x512xf32>
    %c0_5 = arith.constant 0 : index
    %c0_6 = arith.constant 0 : index
    %3 = vector.load %arg4[%c0_5, %c0_6] : memref<8x512xf32, #tpu.memory_space<vmem>>, vector<8x512xf32>
    %4 = arith.mulf %0, %0 : vector<8x512xf32>
    %5 = arith.mulf %1, %1 : vector<8x512xf32>
    %6 = arith.addf %4, %5 : vector<8x512xf32>
    %cst = arith.constant 1.000000e-07 : f32
    %7 = vector.broadcast %cst : f32 to vector<8x512xf32>
    %8 = arith.maximumf %6, %7 : vector<8x512xf32>
    %9 = arith.mulf %2, %2 : vector<8x512xf32>
    %10 = arith.mulf %3, %3 : vector<8x512xf32>
    %11 = arith.addf %9, %10 : vector<8x512xf32>
    %cst_7 = arith.constant 1.000000e-07 : f32
    %12 = vector.broadcast %cst_7 : f32 to vector<8x512xf32>
    %13 = arith.maximumf %11, %12 : vector<8x512xf32>
    %14 = math.log %8 : vector<8x512xf32>
    %15 = math.rsqrt %8 : vector<8x512xf32>
    %16 = arith.mulf %14, %15 : vector<8x512xf32>
    %17 = math.log %13 : vector<8x512xf32>
    %18 = math.rsqrt %13 : vector<8x512xf32>
    %19 = arith.mulf %17, %18 : vector<8x512xf32>
    %20 = arith.mulf %0, %16 : vector<8x512xf32>
    %21 = arith.mulf %2, %19 : vector<8x512xf32>
    %22 = arith.subf %20, %21 : vector<8x512xf32>
    %23 = arith.mulf %1, %16 : vector<8x512xf32>
    %24 = arith.mulf %3, %19 : vector<8x512xf32>
    %25 = arith.subf %23, %24 : vector<8x512xf32>
    %26 = arith.mulf %22, %22 : vector<8x512xf32>
    %27 = arith.mulf %25, %25 : vector<8x512xf32>
    %28 = arith.addf %26, %27 : vector<8x512xf32>
    %cst_8 = arith.constant 4.000000e-07 : f32
    %29 = vector.broadcast %cst_8 : f32 to vector<8x512xf32>
    %30 = arith.maximumf %28, %29 : vector<8x512xf32>
    %31 = math.sqrt %30 : vector<8x512xf32>
    %32 = arith.subf %0, %2 : vector<8x512xf32>
    %33 = arith.subf %1, %3 : vector<8x512xf32>
    %34 = arith.mulf %32, %32 : vector<8x512xf32>
    %35 = arith.mulf %33, %33 : vector<8x512xf32>
    %36 = arith.addf %34, %35 : vector<8x512xf32>
    %cst_9 = arith.constant 1.000000e-07 : f32
    %37 = vector.broadcast %cst_9 : f32 to vector<8x512xf32>
    %38 = arith.maximumf %36, %37 : vector<8x512xf32>
    %39 = tpu.iota {dimensions = array<i32: 2>} : vector<1x8x128xi32>
    %40 = vector.shape_cast %38 : vector<8x512xf32> to vector<1x8x512xf32>
    %cst_10 = arith.constant dense<0.000000e+00> : vector<1xf32>
    %41 = vector.multi_reduction <add>, %40, %cst_10 [1, 2] : vector<1x8x512xf32> to vector<1xf32>
    %42 = vector.shape_cast %41 : vector<1xf32> to vector<1x1x1xf32>
    %43 = vector.extract %42[0, 0, 0] : f32 from vector<1x1x1xf32>
    %44 = vector.shape_cast %13 : vector<8x512xf32> to vector<1x8x512xf32>
    %cst_11 = arith.constant dense<0.000000e+00> : vector<1xf32>
    %45 = vector.multi_reduction <add>, %44, %cst_11 [1, 2] : vector<1x8x512xf32> to vector<1xf32>
    %46 = vector.shape_cast %45 : vector<1xf32> to vector<1x1x1xf32>
    %47 = vector.extract %46[0, 0, 0] : f32 from vector<1x1x1xf32>
    %48 = vector.shape_cast %31 : vector<8x512xf32> to vector<1x8x512xf32>
    %cst_12 = arith.constant dense<0.000000e+00> : vector<1xf32>
    %49 = vector.multi_reduction <add>, %48, %cst_12 [1, 2] : vector<1x8x512xf32> to vector<1xf32>
    %50 = vector.shape_cast %49 : vector<1xf32> to vector<1x1x1xf32>
    %51 = vector.extract %50[0, 0, 0] : f32 from vector<1x1x1xf32>
    %c0_i32 = arith.constant 0 : i32
    %52 = vector.broadcast %c0_i32 : i32 to vector<1x8x128xi32>
    %53 = arith.cmpi eq, %39, %52 : vector<1x8x128xi32>
    %c1_i32 = arith.constant 1 : i32
    %54 = vector.broadcast %c1_i32 : i32 to vector<1x8x128xi32>
    %55 = arith.cmpi eq, %39, %54 : vector<1x8x128xi32>
    %c2_i32 = arith.constant 2 : i32
    %56 = vector.broadcast %c2_i32 : i32 to vector<1x8x128xi32>
    %57 = arith.cmpi eq, %39, %56 : vector<1x8x128xi32>
    %cst_13 = arith.constant 0.000000e+00 : f32
    %58 = vector.broadcast %51 : f32 to vector<1x8x128xf32>
    %59 = vector.broadcast %cst_13 : f32 to vector<1x8x128xf32>
    %60 = arith.select %57, %58, %59 : vector<1x8x128xi1>, vector<1x8x128xf32>
    %61 = vector.broadcast %47 : f32 to vector<1x8x128xf32>
    %62 = arith.select %55, %61, %60 : vector<1x8x128xi1>, vector<1x8x128xf32>
    %63 = vector.broadcast %43 : f32 to vector<1x8x128xf32>
    %64 = arith.select %53, %63, %62 : vector<1x8x128xi1>, vector<1x8x128xf32>
    %c0_14 = arith.constant 0 : index
    %c0_15 = arith.constant 0 : index
    %c0_16 = arith.constant 0 : index
    %65 = vector.load %arg5[%c0_14, %c0_15, %c0_16] : memref<1x8x128xf32, #tpu.memory_space<vmem>>, vector<1x8x128xf32>
    tpu.vector_store %arg5[%c0_14, %c0_15, %c0_16], %64 {strides = array<i32>} : memref<1x8x128xf32, #tpu.memory_space<vmem>>, vector<1x8x128xf32>,
    return
  }
  func.func @transform_0(%arg0: i32) -> (i32, i32) {
    %c0_i32 = arith.constant 0 : i32
    %c0_i32_0 = arith.constant 0 : i32
    return %arg0, %c0_i32 : i32, i32
  }
  func.func @transform_1(%arg0: i32) -> (i32, i32) {
    %c0_i32 = arith.constant 0 : i32
    %c0_i32_0 = arith.constant 0 : i32
    return %arg0, %c0_i32 : i32, i32
  }
  func.func @transform_2(%arg0: i32) -> (i32, i32) {
    %c0_i32 = arith.constant 0 : i32
    %c0_i32_0 = arith.constant 0 : i32
    return %arg0, %c0_i32 : i32, i32
  }
  func.func @transform_3(%arg0: i32) -> (i32, i32) {
    %c0_i32 = arith.constant 0 : i32
    %c0_i32_0 = arith.constant 0 : i32
    return %arg0, %c0_i32 : i32, i32
  }
  func.func @transform_4(%arg0: i32) -> (i32, i32, i32) {
    %c0_i32 = arith.constant 0 : i32
    %c0_i32_0 = arith.constant 0 : i32
    %c0_i32_1 = arith.constant 0 : i32
    return %arg0, %c0_i32, %c0_i32_0 : i32, i32, i32
  }
}

</mosaic_0001>

<llo_original>
// kernel: stft_loss.1
$region0: #{stft_loss.1}
  #allocation0 [shape = 'u32[]', space=smem, size = 0x4, offset = 0x4, fixed_abs, tag = 'smem constant byte address 0x4 - core index']
  #allocation1 [shape = 'u32[72,128]{1,0:T(1,128)}', space=vmem, size = 0x9000, scoped, tag = 'internal scratch']
  %s0 = inlined_call_operand.vmem [shape: f32[16,512], index: 0, kind: input, shape index: {}]
  %s1 = inlined_call_operand.vmem [shape: f32[16,512], index: 1, kind: input, shape index: {}]
  %s2 = inlined_call_operand.vmem [shape: f32[16,512], index: 2, kind: input, shape index: {}]
  %s3 = inlined_call_operand.vmem [shape: f32[16,512], index: 3, kind: input, shape index: {}]
  %s4 = inlined_call_operand.vmem [shape: f32[2,8,128], index: 4, kind: output, shape index: {}]
  %s5 = sld [smem:[#allocation0]]
  $region49: #{stft_loss.1} parent=0
    _
  %s7 = ssub.s32 1, %s5
  %s8 = scalar_select 0, %s7, %s5
  loop: start=0, step=1, limit=4
  $region2: #{stft_loss.1} parent=0 // loop_pre_header
    _
  $region3: #{stft_loss.1} parent=0 // loop_header
    %s10 = sphi 0, %s14
    %p11 = scmp.ge.s32.totalorder %s10, 4
    %s20 = sphi 0, %s22
    %s23 = sphi 0, %s20
    %s24 = sphi 0, %s23
    %s40 = sphi 0, %s24
    %s46 = sphi 0, %s48
    %s49 = sphi 0, %s46
    %s50 = sphi 0, %s49
    %s66 = sphi 0, %s50
    %s72 = sphi 0, %s74
    %s75 = sphi 0, %s72
    %s76 = sphi 0, %s75
    %s92 = sphi 0, %s76
    %s98 = sphi 0, %s100
    %s101 = sphi 0, %s98
    %s102 = sphi 0, %s101
    %s118 = sphi 0, %s102
    %s124 = sphi 0, %s126
    %s127 = sphi 0, %s124
    %s128 = sphi 0, %s127
    %s144 = sphi 0, %s128
  $region4: #{stft_loss.1} parent=0 // loop_header_branch
    %13 = sbr.rel (%p11) target = $region8
  $region5: #{stft_loss.1} parent=0 // loop_body
    %s15 = ssub.s32 %s10, 1
    %s16 = ssub.s32 %s10, 2
    %s17 = sadd.s32 %s10, 1
    %s18 = ssub.s32 %s10, %s17
    %p19 = scmp.eq.s32.totalorder %s18, 0
    %s21 = sadd.s32 %s20, 1
    %s22 = scalar_select %p19, %s20, %s21
    %p25 = pneg %p19
    %p26 = scmp.eq.s32.totalorder %s10, 1
    %p27 = por %p25, %p26
    %p28 = scmp.ne.s32.totalorder %s20, %s23
    %p29 = scmp.eq.s32.totalorder %s10, 0
    %p30 = por %p28, %p29
    %p31 = scmp.ne.s32.totalorder %s20, %s23
    %p32 = scmp.eq.s32.totalorder %s15, 1
    %p33 = por %p31, %p32
    %p34 = scmp.ne.s32.totalorder %s23, %s24
    %p35 = scmp.eq.s32.totalorder %s15, 0
    %p36 = por %p34, %p35
    %p37 = scmp.ne.s32.totalorder %s23, %s24
    %p38 = scmp.eq.s32.totalorder %s16, 1
    %p39 = por %p37, %p38
    %p41 = scmp.ne.s32.totalorder %s24, %s40
    %p42 = scmp.eq.s32.totalorder %s16, 0
    %p43 = por %p41, %p42
    %s44 = ssub.s32 %s10, %s17
    %p45 = scmp.eq.s32.totalorder %s44, 0
    %s47 = sadd.s32 %s46, 1
    %s48 = scalar_select %p45, %s46, %s47
    %p51 = pneg %p45
    %p52 = scmp.eq.s32.totalorder %s10, 1
    %p53 = por %p51, %p52
    %p54 = scmp.ne.s32.totalorder %s46, %s49
    %p55 = scmp.eq.s32.totalorder %s10, 0
    %p56 = por %p54, %p55
    %p57 = scmp.ne.s32.totalorder %s46, %s49
    %p58 = scmp.eq.s32.totalorder %s15, 1
    %p59 = por %p57, %p58
    %p60 = scmp.ne.s32.totalorder %s49, %s50
    %p61 = scmp.eq.s32.totalorder %s15, 0
    %p62 = por %p60, %p61
    %p63 = scmp.ne.s32.totalorder %s49, %s50
    %p64 = scmp.eq.s32.totalorder %s16, 1
    %p65 = por %p63, %p64
    %p67 = scmp.ne.s32.totalorder %s50, %s66
    %p68 = scmp.eq.s32.totalorder %s16, 0
    %p69 = por %p67, %p68
    %s70 = ssub.s32 %s10, %s17
    %p71 = scmp.eq.s32.totalorder %s70, 0
    %s73 = sadd.s32 %s72, 1
    %s74 = scalar_select %p71, %s72, %s73
    %p77 = pneg %p71
    %p78 = scmp.eq.s32.totalorder %s10, 1
    %p79 = por %p77, %p78
    %p80 = scmp.ne.s32.totalorder %s72, %s75
    %p81 = scmp.eq.s32.totalorder %s10, 0
    %p82 = por %p80, %p81
    %p83 = scmp.ne.s32.totalorder %s72, %s75
    %p84 = scmp.eq.s32.totalorder %s15, 1
    %p85 = por %p83, %p84
    %p86 = scmp.ne.s32.totalorder %s75, %s76
    %p87 = scmp.eq.s32.totalorder %s15, 0
    %p88 = por %p86, %p87
    %p89 = scmp.ne.s32.totalorder %s75, %s76
    %p90 = scmp.eq.s32.totalorder %s16, 1
    %p91 = por %p89, %p90
    %p93 = scmp.ne.s32.totalorder %s76, %s92
    %p94 = scmp.eq.s32.totalorder %s16, 0
    %p95 = por %p93, %p94
    %s96 = ssub.s32 %s10, %s17
    %p97 = scmp.eq.s32.totalorder %s96, 0
    %s99 = sadd.s32 %s98, 1
    %s100 = scalar_select %p97, %s98, %s99
    %p103 = pneg %p97
    %p104 = scmp.eq.s32.totalorder %s10, 1
    %p105 = por %p103, %p104
    %p106 = scmp.ne.s32.totalorder %s98, %s101
    %p107 = scmp.eq.s32.totalorder %s10, 0
    %p108 = por %p106, %p107
    %p109 = scmp.ne.s32.totalorder %s98, %s101
    %p110 = scmp.eq.s32.totalorder %s15, 1
    %p111 = por %p109, %p110
    %p112 = scmp.ne.s32.totalorder %s101, %s102
    %p113 = scmp.eq.s32.totalorder %s15, 0
    %p114 = por %p112, %p113
    %p115 = scmp.ne.s32.totalorder %s101, %s102
    %p116 = scmp.eq.s32.totalorder %s16, 1
    %p117 = por %p115, %p116
    %p119 = scmp.ne.s32.totalorder %s102, %s118
    %p120 = scmp.eq.s32.totalorder %s16, 0
    %p121 = por %p119, %p120
    %s122 = ssub.s32 %s10, %s17
    %p123 = scmp.eq.s32.totalorder %s122, 0
    %s125 = sadd.s32 %s124, 1
    %s126 = scalar_select %p123, %s124, %s125
    %p129 = pneg %p123
    %p130 = scmp.eq.s32.totalorder %s10, 1
    %p131 = por %p129, %p130
    %p132 = scmp.ne.s32.totalorder %s124, %s127
    %p133 = scmp.eq.s32.totalorder %s10, 0
    %p134 = por %p132, %p133
    %p135 = scmp.ne.s32.totalorder %s124, %s127
    %p136 = scmp.eq.s32.totalorder %s15, 1
    %p137 = por %p135, %p136
    %p138 = scmp.ne.s32.totalorder %s127, %s128
    %p139 = scmp.eq.s32.totalorder %s15, 0
    %p140 = por %p138, %p139
    %p141 = scmp.ne.s32.totalorder %s127, %s128
    %p142 = scmp.eq.s32.totalorder %s16, 1
    %p143 = por %p141, %p142
    %p145 = scmp.ne.s32.totalorder %s128, %s144
    %p146 = scmp.eq.s32.totalorder %s16, 0
    %p147 = por %p145, %p146
    %p148 = scmp.le.s32.totalorder 1, %s10
    %p149 = scmp.lt.s32.totalorder %s10, 3
    %p150 = pnand %p148, %p149
    %p151 = pneg %p150
    // Predicated region
    $region9: #{stft_loss.1} parent=5 // pred_check
      _
    $region10: #{stft_loss.1} parent=5 // pred_check_branch
      %153 = sbr.rel (%p150) target = $region12
    $region11: #{stft_loss.1} parent=5 // pred_region
      %s154 = ssub.s32 %s10, 1
    $region12: #{stft_loss.1} parent=5 // pred_fallthru
      _
    %p155 = scmp.lt.s32.totalorder %s10, 2
    // Predicated region
    $region13: #{stft_loss.1} parent=5 // pred_check
      %p156 = pneg %p155
    $region14: #{stft_loss.1} parent=5 // pred_check_branch
      %158 = sbr.rel (%p156) target = $region16
    $region15: #{stft_loss.1} parent=5 // pred_region
      // Predicated region
      $region17: #{stft_loss.1} parent=15 // pred_check
        %p159 = pneg %p30
      $region18: #{stft_loss.1} parent=15 // pred_check_branch
        %161 = sbr.rel (%p159) target = $region20
      $region19: #{stft_loss.1} parent=15 // pred_region
        %p162 = scmp.lt.s32.totalorder %s10, 1
        %s163 = scalar_select %p162, %s10, 1
        %s164 = smul.addr %s163, 4
        %s165 = smul.addr %s164, 8
        %s166 = scalar_lea.vmem %s0, %s165
      $region20: #{stft_loss.1} parent=15 // pred_fallthru
        _
      // Predicated region
      $region21: #{stft_loss.1} parent=15 // pred_check
        %p167 = pneg %p56
      $region22: #{stft_loss.1} parent=15 // pred_check_branch
        %169 = sbr.rel (%p167) target = $region24
      $region23: #{stft_loss.1} parent=15 // pred_region
        %p170 = scmp.lt.s32.totalorder %s10, 1
        %s171 = scalar_select %p170, %s10, 1
        %s172 = smul.addr %s171, 4
        %s173 = smul.addr %s172, 8
        %s174 = scalar_lea.vmem %s1, %s173
      $region24: #{stft_loss.1} parent=15 // pred_fallthru
        _
      // Predicated region
      $region25: #{stft_loss.1} parent=15 // pred_check
        %p175 = pneg %p82
      $region26: #{stft_loss.1} parent=15 // pred_check_branch
        %177 = sbr.rel (%p175) target = $region28
      $region27: #{stft_loss.1} parent=15 // pred_region
        %p178 = scmp.lt.s32.totalorder %s10, 1
        %s179 = scalar_select %p178, %s10, 1
        %s180 = smul.addr %s179, 4
        %s181 = smul.addr %s180, 8
        %s182 = scalar_lea.vmem %s2, %s181
      $region28: #{stft_loss.1} parent=15 // pred_fallthru
        _
      // Predicated region
      $region29: #{stft_loss.1} parent=15 // pred_check
        %p183 = pneg %p108
      $region30: #{stft_loss.1} parent=15 // pred_check_branch
        %185 = sbr.rel (%p183) target = $region32
      $region31: #{stft_loss.1} parent=15 // pred_region
        %p186 = scmp.lt.s32.totalorder %s10, 1
        %s187 = scalar_select %p186, %s10, 1
        %s188 = smul.addr %s187, 4
        %s189 = smul.addr %s188, 8
        %s190 = scalar_lea.vmem %s3, %s189
      $region32: #{stft_loss.1} parent=15 // pred_fallthru
        _
    $region16: #{stft_loss.1} parent=5 // pred_fallthru
      _
    %p191 = scmp.le.s32.totalorder 1, %s10
    %p192 = scmp.lt.s32.totalorder %s10, 3
    %p193 = pnand %p191, %p192
    %p194 = pneg %p193
    // Predicated region
    $region33: #{stft_loss.1} parent=5 // pred_check
      _
    $region34: #{stft_loss.1} parent=5 // pred_check_branch
      %196 = sbr.rel (%p193) target = $region36
    $region35: #{stft_loss.1} parent=5 // pred_region
      %s197 = ssub.s32 %s10, 1
      %p198 = scmp.lt.s32.totalorder %s15, 1
      %s199 = scalar_select %p198, %s15, 1
      %s200 = smul.addr %s199, 4
      %s201 = smul.addr %s200, 8
      %s202 = scalar_lea.vmem %s0, %s201
      %p203 = pneg %p36
      %p204 = pneg %p33
      %p205 = scmp.lt.s32.totalorder %s15, 1
      %s206 = scalar_select %p205, %s15, 1
      %s207 = smul.addr %s206, 4
      %s208 = smul.addr %s207, 8
      %s209 = scalar_lea.vmem %s1, %s208
      %p210 = pneg %p62
      %p211 = pneg %p59
      %p212 = scmp.lt.s32.totalorder %s15, 1
      %s213 = scalar_select %p212, %s15, 1
      %s214 = smul.addr %s213, 4
      %s215 = smul.addr %s214, 8
      %s216 = scalar_lea.vmem %s2, %s215
      %p217 = pneg %p88
      %p218 = pneg %p85
      %p219 = scmp.lt.s32.totalorder %s15, 1
      %s220 = scalar_select %p219, %s15, 1
      %s221 = smul.addr %s220, 4
      %s222 = smul.addr %s221, 8
      %s223 = scalar_lea.vmem %s3, %s222
      %p224 = pneg %p114
      %p225 = pneg %p111
      %p226 = pneg %p140
      %p227 = pneg %p137
      %p228 = scmp.lt.s32.totalorder %s15, 1
      %s229 = scalar_select %p228, %s15, 1
      %s230 = smul.addr %s229, 8
      %s231 = scalar_lea.vmem %s4, %s230
      %p232 = scmp.lt.s32.totalorder %s15, 1
      %s233 = scalar_select %p232, %s15, 1
      %s234 = smul.addr %s233, 4
      %s235 = smul.addr %s234, 8
      %s236 = scalar_lea.vmem %s0, %s235
      %p237 = scmp.lt.s32.totalorder %s15, 1
      %s238 = scalar_select %p237, %s15, 1
      %s239 = smul.addr %s238, 4
      %s240 = smul.addr %s239, 8
      %s241 = scalar_lea.vmem %s1, %s240
      %p242 = scmp.lt.s32.totalorder %s15, 1
      %s243 = scalar_select %p242, %s15, 1
      %s244 = smul.addr %s243, 4
      %s245 = smul.addr %s244, 8
      %s246 = scalar_lea.vmem %s2, %s245
      %p247 = scmp.lt.s32.totalorder %s15, 1
      %s248 = scalar_select %p247, %s15, 1
      %s249 = smul.addr %s248, 4
      %s250 = smul.addr %s249, 8
      %s251 = scalar_lea.vmem %s3, %s250
      %p252 = scmp.lt.s32.totalorder %s15, 1
      %s253 = scalar_select %p252, %s15, 1
      %s254 = smul.addr %s253, 8
      %s255 = scalar_lea.vmem %s4, %s254
      %v256 = vld [vmem:[%s236] sm:$0xff]
      %v257 = vld [vmem:[%s236 + $0x8] sm:$0xff]
      %v258 = vld [vmem:[%s236 + $0x10] sm:$0xff]
      %v259 = vld [vmem:[%s236 + $0x18] sm:$0xff]
      %v260 = vld [vmem:[%s241] sm:$0xff]
      %v261 = vld [vmem:[%s241 + $0x8] sm:$0xff]
      %v262 = vld [vmem:[%s241 + $0x10] sm:$0xff]
      %v263 = vld [vmem:[%s241 + $0x18] sm:$0xff]
      %v264 = vld [vmem:[%s246] sm:$0xff]
      %v265 = vld [vmem:[%s246 + $0x8] sm:$0xff]
      %v266 = vld [vmem:[%s246 + $0x10] sm:$0xff]
      %v267 = vld [vmem:[%s246 + $0x18] sm:$0xff]
      %v268 = vld [vmem:[%s251] sm:$0xff]
      %v269 = vld [vmem:[%s251 + $0x8] sm:$0xff]
      %v270 = vld [vmem:[%s251 + $0x10] sm:$0xff]
      %v271 = vld [vmem:[%s251 + $0x18] sm:$0xff]
      %v272 = vmul.f32 %v256, %v256
      %v273 = vmul.f32 %v257, %v257
      %v274 = vmul.f32 %v258, %v258
      %v275 = vmul.f32 %v259, %v259
      %v276 = vmul.f32 %v260, %v260
      %v277 = vmul.f32 %v261, %v261
      %v278 = vmul.f32 %v262, %v262
      %v279 = vmul.f32 %v263, %v263
      %v280 = vadd.f32 %v272, %v276
      %v281 = vadd.f32 %v273, %v277
      %v282 = vadd.f32 %v274, %v278
      %v283 = vadd.f32 %v275, %v279
      %v284 = vmax.f32 %v280, 1e-07
      %v285 = vmax.f32 %v281, 1e-07
      %v286 = vmax.f32 %v282, 1e-07
      %v287 = vmax.f32 %v283, 1e-07
      %v288 = vmul.f32 %v264, %v264
      %v289 = vmul.f32 %v265, %v265
      %v290 = vmul.f32 %v266, %v266
      %v291 = vmul.f32 %v267, %v267
      %v292 = vmul.f32 %v268, %v268
      %v293 = vmul.f32 %v269, %v269
      %v294 = vmul.f32 %v270, %v270
      %v295 = vmul.f32 %v271, %v271
      %v296 = vadd.f32 %v288, %v292
      %v297 = vadd.f32 %v289, %v293
      %v298 = vadd.f32 %v290, %v294
      %v299 = vadd.f32 %v291, %v295
      %v300 = vmax.f32 %v296, 1e-07
      %v301 = vmax.f32 %v297, 1e-07
      %v302 = vmax.f32 %v298, 1e-07
      %v303 = vmax.f32 %v299, 1e-07
      %v304 = vlog2.pop %v284
      %v305 = vmul.f32 %v304, 0.6931472
      %v306 = vlog2.pop %v285
      %v307 = vmul.f32 %v306, 0.6931472
      %v308 = vlog2.pop %v286
      %v309 = vmul.f32 %v308, 0.6931472
      %v310 = vlog2.pop %v287
      %v311 = vmul.f32 %v310, 0.6931472
      %v312 = vrsqrt.pop %v284
      %v313 = vmul.f32 %v312, %v284
      %v314 = vmul.f32 %v313, %v312
      %v315 = vmul.f32 0.5, %v314
      %v316 = vsub.f32 1.5, %v315
      %v317 = vmul.f32 %v312, %v316
      %vm318 = vweird.f32 %v284
      %vm319 = vweird.f32 %v312
      %vm320 = vmor %vm318, %vm319
      %v321 = vsel %vm320, %v312, %v317
      %v322 = vrsqrt.pop %v285
      %v323 = vmul.f32 %v322, %v285
      %v324 = vmul.f32 %v323, %v322
      %v325 = vmul.f32 0.5, %v324
      %v326 = vsub.f32 1.5, %v325
      %v327 = vmul.f32 %v322, %v326
      %vm328 = vweird.f32 %v285
      %vm329 = vweird.f32 %v322
      %vm330 = vmor %vm328, %vm329
      %v331 = vsel %vm330, %v322, %v327
      %v332 = vrsqrt.pop %v286
      %v333 = vmul.f32 %v332, %v286
      %v334 = vmul.f32 %v333, %v332
      %v335 = vmul.f32 0.5, %v334
      %v336 = vsub.f32 1.5, %v335
      %v337 = vmul.f32 %v332, %v336
      %vm338 = vweird.f32 %v286
      %vm339 = vweird.f32 %v332
      %vm340 = vmor %vm338, %vm339
      %v341 = vsel %vm340, %v332, %v337
      %v342 = vrsqrt.pop %v287
      %v343 = vmul.f32 %v342, %v287
      %v344 = vmul.f32 %v343, %v342
      %v345 = vmul.f32 0.5, %v344
      %v346 = vsub.f32 1.5, %v345
      %v347 = vmul.f32 %v342, %v346
      %vm348 = vweird.f32 %v287
      %vm349 = vweird.f32 %v342
      %vm350 = vmor %vm348, %vm349
      %v351 = vsel %vm350, %v342, %v347
      %v352 = vmul.f32 %v305, %v321
      %v353 = vmul.f32 %v307, %v331
      %v354 = vmul.f32 %v309, %v341
      %v355 = vmul.f32 %v311, %v351
      %v356 = vlog2.pop %v300
      %v357 = vmul.f32 %v356, 0.6931472
      %v358 = vlog2.pop %v301
      %v359 = vmul.f32 %v358, 0.6931472
      %v360 = vlog2.pop %v302
      %v361 = vmul.f32 %v360, 0.6931472
      %v362 = vlog2.pop %v303
      %v363 = vmul.f32 %v362, 0.6931472
      %v364 = vrsqrt.pop %v300
      %v365 = vmul.f32 %v364, %v300
      %v366 = vmul.f32 %v365, %v364
      %v367 = vmul.f32 0.5, %v366
      %v368 = vsub.f32 1.5, %v367
      %v369 = vmul.f32 %v364, %v368
      %vm370 = vweird.f32 %v300
      %vm371 = vweird.f32 %v364
      %vm372 = vmor %vm370, %vm371
      %v373 = vsel %vm372, %v364, %v369
      %v374 = vrsqrt.pop %v301
      %v375 = vmul.f32 %v374, %v301
      %v376 = vmul.f32 %v375, %v374
      %v377 = vmul.f32 0.5, %v376
      %v378 = vsub.f32 1.5, %v377
      %v379 = vmul.f32 %v374, %v378
      %vm380 = vweird.f32 %v301
      %vm381 = vweird.f32 %v374
      %vm382 = vmor %vm380, %vm381
      %v383 = vsel %vm382, %v374, %v379
      %v384 = vrsqrt.pop %v302
      %v385 = vmul.f32 %v384, %v302
      %v386 = vmul.f32 %v385, %v384
      %v387 = vmul.f32 0.5, %v386
      %v388 = vsub.f32 1.5, %v387
      %v389 = vmul.f32 %v384, %v388
      %vm390 = vweird.f32 %v302
      %vm391 = vweird.f32 %v384
      %vm392 = vmor %vm390, %vm391
      %v393 = vsel %vm392, %v384, %v389
      %v394 = vrsqrt.pop %v303
      %v395 = vmul.f32 %v394, %v303
      %v396 = vmul.f32 %v395, %v394
      %v397 = vmul.f32 0.5, %v396
      %v398 = vsub.f32 1.5, %v397
      %v399 = vmul.f32 %v394, %v398
      %vm400 = vweird.f32 %v303
      %vm401 = vweird.f32 %v394
      %vm402 = vmor %vm400, %vm401
      %v403 = vsel %vm402, %v394, %v399
      %v404 = vmul.f32 %v357, %v373
      %v405 = vmul.f32 %v359, %v383
      %v406 = vmul.f32 %v361, %v393
      %v407 = vmul.f32 %v363, %v403
      %v408 = vmul.f32 %v256, %v352
      %v409 = vmul.f32 %v257, %v353
      %v410 = vmul.f32 %v258, %v354
      %v411 = vmul.f32 %v259, %v355
      %v412 = vmul.f32 %v264, %v404
      %v413 = vmul.f32 %v265, %v405
      %v414 = vmul.f32 %v266, %v406
      %v415 = vmul.f32 %v267, %v407
      %v416 = vsub.f32 %v408, %v412
      %v417 = vsub.f32 %v409, %v413
      %v418 = vsub.f32 %v410, %v414
      %v419 = vsub.f32 %v411, %v415
      %v420 = vmul.f32 %v260, %v352
      %v421 = vmul.f32 %v261, %v353
      %v422 = vmul.f32 %v262, %v354
      %v423 = vmul.f32 %v263, %v355
      %v424 = vmul.f32 %v268, %v404
      %v425 = vmul.f32 %v269, %v405
      %v426 = vmul.f32 %v270, %v406
      %v427 = vmul.f32 %v271, %v407
      %v428 = vsub.f32 %v420, %v424
      %v429 = vsub.f32 %v421, %v425
      %v430 = vsub.f32 %v422, %v426
      %v431 = vsub.f32 %v423, %v427
      %v432 = vmul.f32 %v416, %v416
      %v433 = vmul.f32 %v417, %v417
      %v434 = vmul.f32 %v418, %v418
      %v435 = vmul.f32 %v419, %v419
      %v436 = vmul.f32 %v428, %v428
      %v437 = vmul.f32 %v429, %v429
      %v438 = vmul.f32 %v430, %v430
      %v439 = vmul.f32 %v431, %v431
      %v440 = vadd.f32 %v432, %v436
      %v441 = vadd.f32 %v433, %v437
      %v442 = vadd.f32 %v434, %v438
      %v443 = vadd.f32 %v435, %v439
      %v444 = vmax.f32 %v440, 4e-07
      %v445 = vmax.f32 %v441, 4e-07
      %v446 = vmax.f32 %v442, 4e-07
      %v447 = vmax.f32 %v443, 4e-07
      %v448 = vrsqrt.pop %v444
      %v449 = vmul.f32 %v448, %v444
      %v450 = vmul.f32 %v449, %v448
      %v451 = vmul.f32 0.5, %v450
      %v452 = vsub.f32 1.5, %v451
      %v453 = vmul.f32 %v448, %v452
      %v454 = vmul.f32 %v444, %v453
      %vm455 = vcmp.eq.f32.partialorder %v444, inf
      %v456 = vsel %vm455, %v444, %v454
      %vm457 = vcmp.eq.f32.partialorder %v444, 0.0
      %v458 = vand.u32 %v444, 2147483648
      %v459 = vsel %vm457, %v458, %v456
      %v460 = vrsqrt.pop %v445
      %v461 = vmul.f32 %v460, %v445
      %v462 = vmul.f32 %v461, %v460
      %v463 = vmul.f32 0.5, %v462
      %v464 = vsub.f32 1.5, %v463
      %v465 = vmul.f32 %v460, %v464
      %v466 = vmul.f32 %v445, %v465
      %vm467 = vcmp.eq.f32.partialorder %v445, inf
      %v468 = vsel %vm467, %v445, %v466
      %vm469 = vcmp.eq.f32.partialorder %v445, 0.0
      %v470 = vand.u32 %v445, 2147483648
      %v471 = vsel %vm469, %v470, %v468
      %v472 = vrsqrt.pop %v446
      %v473 = vmul.f32 %v472, %v446
      %v474 = vmul.f32 %v473, %v472
      %v475 = vmul.f32 0.5, %v474
      %v476 = vsub.f32 1.5, %v475
      %v477 = vmul.f32 %v472, %v476
      %v478 = vmul.f32 %v446, %v477
      %vm479 = vcmp.eq.f32.partialorder %v446, inf
      %v480 = vsel %vm479, %v446, %v478
      %vm481 = vcmp.eq.f32.partialorder %v446, 0.0
      %v482 = vand.u32 %v446, 2147483648
      %v483 = vsel %vm481, %v482, %v480
      %v484 = vrsqrt.pop %v447
      %v485 = vmul.f32 %v484, %v447
      %v486 = vmul.f32 %v485, %v484
      %v487 = vmul.f32 0.5, %v486
      %v488 = vsub.f32 1.5, %v487
      %v489 = vmul.f32 %v484, %v488
      %v490 = vmul.f32 %v447, %v489
      %vm491 = vcmp.eq.f32.partialorder %v447, inf
      %v492 = vsel %vm491, %v447, %v490
      %vm493 = vcmp.eq.f32.partialorder %v447, 0.0
      %v494 = vand.u32 %v447, 2147483648
      %v495 = vsel %vm493, %v494, %v492
      %v496 = vsub.f32 %v256, %v264
      %v497 = vsub.f32 %v257, %v265
      %v498 = vsub.f32 %v258, %v266
      %v499 = vsub.f32 %v259, %v267
      %v500 = vsub.f32 %v260, %v268
      %v501 = vsub.f32 %v261, %v269
      %v502 = vsub.f32 %v262, %v270
      %v503 = vsub.f32 %v263, %v271
      %v504 = vmul.f32 %v496, %v496
      %v505 = vmul.f32 %v497, %v497
      %v506 = vmul.f32 %v498, %v498
      %v507 = vmul.f32 %v499, %v499
      %v508 = vmul.f32 %v500, %v500
      %v509 = vmul.f32 %v501, %v501
      %v510 = vmul.f32 %v502, %v502
      %v511 = vmul.f32 %v503, %v503
      %v512 = vadd.f32 %v504, %v508
      %v513 = vadd.f32 %v505, %v509
      %v514 = vadd.f32 %v506, %v510
      %v515 = vadd.f32 %v507, %v511
      %v516 = vmax.f32 %v512, 1e-07
      %v517 = vmax.f32 %v513, 1e-07
      %v518 = vmax.f32 %v514, 1e-07
      %v519 = vmax.f32 %v515, 1e-07
      %v520 = vlaneseq
      %v521 = vand.u32 %v520, 127
      %v522 = vadd.f32 %v516, %v517
      %v523 = vadd.f32 %v522, %v518
      %v524 = vadd.f32 %v523, %v519
      %525 = vadd.xlane.f32.xlu0 %v524
      %v526 = vpop.xlane.xlu0 %525
      %v527 = vrot.slane %v526, 4
      %v528 = vadd.f32 %v526, %v527
      %v529 = vrot.slane %v528, 2
      %v530 = vadd.f32 %v528, %v529
      %v531 = vrot.slane %v530, 1
      %v532 = vadd.f32 %v530, %v531
      %s533 = vtos %v532
      %v534 = vadd.f32 %v300, %v301
      %v535 = vadd.f32 %v534, %v302
      %v536 = vadd.f32 %v535, %v303
      %537 = vadd.xlane.f32.xlu0 %v536
      %v538 = vpop.xlane.xlu0 %537
      %v539 = vrot.slane %v538, 4
      %v540 = vadd.f32 %v538, %v539
      %v541 = vrot.slane %v540, 2
      %v542 = vadd.f32 %v540, %v541
      %v543 = vrot.slane %v542, 1
      %v544 = vadd.f32 %v542, %v543
      %s545 = vtos %v544
      %v546 = vadd.f32 %v459, %v471
      %v547 = vadd.f32 %v546, %v483
      %v548 = vadd.f32 %v547, %v495
      %549 = vadd.xlane.f32.xlu0 %v548
      %v550 = vpop.xlane.xlu0 %549
      %v551 = vrot.slane %v550, 4
      %v552 = vadd.f32 %v550, %v551
      %v553 = vrot.slane %v552, 2
      %v554 = vadd.f32 %v552, %v553
      %v555 = vrot.slane %v554, 1
      %v556 = vadd.f32 %v554, %v555
      %s557 = vtos %v556
      %vm558 = vcmp.eq.s32.totalorder %v521, 0
      %vm559 = vcmp.eq.s32.totalorder %v521, 1
      %vm560 = vcmp.eq.s32.totalorder %v521, 2
      %v561 = vstv %s557
      %v562 = vsel %vm560, %v561, 0.0
      %v563 = vstv %s545
      %v564 = vsel %vm559, %v563, %v562
      %v565 = vstv %s533
      %v566 = vsel %vm558, %v565, %v564
      %567 = vst [vmem:[%s255] sm:$0xff] %v566
      %p568 = scmp.lt.s32.totalorder %s15, 1
      %s569 = scalar_select %p568, %s15, 1
      %s570 = smul.addr %s569, 8
      %s571 = scalar_lea.vmem %s4, %s570
      // Predicated region
      $region37: #{stft_loss.1} parent=35 // pred_check
        %p572 = pneg %p137
      $region38: #{stft_loss.1} parent=35 // pred_check_branch
        %574 = sbr.rel (%p572) target = $region40
      $region39: #{stft_loss.1} parent=35 // pred_region
        _
      $region40: #{stft_loss.1} parent=35 // pred_fallthru
        _
    $region36: #{stft_loss.1} parent=5 // pred_fallthru
      _
    %p575 = scmp.le.s32.totalorder 2, %s10
    // Predicated region
    $region41: #{stft_loss.1} parent=5 // pred_check
      %p576 = pneg %p575
    $region42: #{stft_loss.1} parent=5 // pred_check_branch
      %578 = sbr.rel (%p576) target = $region44
    $region43: #{stft_loss.1} parent=5 // pred_region
      %s579 = ssub.s32 %s10, 2
      // Predicated region
      $region45: #{stft_loss.1} parent=43 // pred_check
        %p580 = pneg %p143
      $region46: #{stft_loss.1} parent=43 // pred_check_branch
        %582 = sbr.rel (%p580) target = $region48
      $region47: #{stft_loss.1} parent=43 // pred_region
        %p583 = scmp.lt.s32.totalorder %s16, 1
        %s584 = scalar_select %p583, %s16, 1
        %s585 = smul.addr %s584, 8
        %s586 = scalar_lea.vmem %s4, %s585
      $region48: #{stft_loss.1} parent=43 // pred_fallthru
        _
    $region44: #{stft_loss.1} parent=5 // pred_fallthru
      _
  $region6: #{stft_loss.1} parent=0 // loop_footer
    %s14 = sadd.s32 1, %s10
  $region7: #{stft_loss.1} parent=0 // loop_footer_branch
    %9 = sbr.rel target = $region3
  $region8: #{stft_loss.1} parent=0 // loop_exit
    _

</llo_original>
